<compile_context>
chip_gen: v5e
topology: v5e:2x2
jax: 0.10.0
libtpu: 0.0.40
codegen_flags: <defaults>
</compile_context>

<pallas_src>
import functools

import jax
import jax.numpy as jnp
from jax.experimental import pallas as pl
from jax.experimental.pallas import tpu as pltpu

LANE = 128            # padded hidden width (80 / 40 -> 128 sublanes)
DEFAULT_TILE = 2048   # batch columns (lanes) per grid step


def _round_up(a, b):
    return ((a + b - 1) // b) * b


def _default_tanh_dtype():
    """bf16 tanh on v6e/v7x (bf16 EUP); f32 on v5e and unknown parts (safe)."""
    try:
        kind = jax.devices()[0].device_kind.lower()
    except Exception:
        return jnp.float32
    if "v6" in kind or "v7" in kind or "trillium" in kind:
        return jnp.bfloat16
    return jnp.float32


def _mlp_kernel(xt_ref,
                w1_ref, b1_ref,
                w2_ref, b2_ref,
                w3_ref, b3_ref,
                w4_ref, b4_ref,
                w5_ref, b5_ref,
                o_ref, *, tanh_dtype):
    """Fused 5-layer MLP, transposed layout: activations are (128, TILE)."""
    x = xt_ref[0:1, :]                                   # (1, TILE) f32
    t = xt_ref[1:2, :]                                   # (1, TILE) f32

    # Layer 1: Linear(2, 80) as a VPU outer-product broadcast.
    # h[i, n] = w1[0, i] * x[n] + w1[1, i] * t[n] + b1[i]
    h = w1_ref[:, 0:1] * x + w1_ref[:, 1:2] * t + b1_ref[...]   # (128, TILE) f32

    def act(v):
        # tanh on the EUP (bf16 on v6e/v7x, f32 on v5e), output bf16 for the MXU.
        return jnp.tanh(v.astype(tanh_dtype)).astype(jnp.bfloat16)

    # Layers 2-4: W^T @ H on the MXU (bf16 operands, f32 accumulation),
    # bias adds stay f32 (lane-broadcast of a (128, 1) column).
    h = jnp.dot(w2_ref[...], act(h),
                preferred_element_type=jnp.float32) + b2_ref[...]
    h = jnp.dot(w3_ref[...], act(h),
                preferred_element_type=jnp.float32) + b3_ref[...]
    h = jnp.dot(w4_ref[...], act(h),
                preferred_element_type=jnp.float32) + b4_ref[...]

    # Layer 5: Linear(40, 1) as VPU multiply + sublane reduction (f32).
    p = jnp.tanh(h) * w5_ref[...]                                 # (128, TILE) f32
    o_ref[...] = jnp.sum(p, axis=0, keepdims=True) + b5_ref[...]  # (1, TILE)   f32


def _pad2d(a, rows, cols):
    r, c = a.shape
    return jnp.pad(a, ((0, rows - r), (0, cols - c)))


def prepare_params(params):
    """One-time: transpose, zero-pad, and cast the MXU operands to bf16."""
    (w1, b1), (w2, b2), (w3, b3), (w4, b4), (w5, b5) = params
    f32, bf16 = jnp.float32, jnp.bfloat16

    w1t = _pad2d(w1.astype(f32).T, LANE, 2)                    # (128, 2)   f32 (VPU)
    b1c = _pad2d(b1.astype(f32)[:, None], LANE, 1)             # (128, 1)   f32
    w2t = _pad2d(w2.astype(f32).T, LANE, LANE).astype(bf16)    # (128, 128) bf16
    b2c = _pad2d(b2.astype(f32)[:, None], LANE, 1)             # (128, 1)   f32
    w3t = _pad2d(w3.astype(f32).T, LANE, LANE).astype(bf16)    # (128, 128) bf16
    b3c = _pad2d(b3.astype(f32)[:, None], LANE, 1)             # (128, 1)   f32
    w4t = _pad2d(w4.astype(f32).T, LANE, LANE).astype(bf16)    # (128, 128) bf16
    b4c = _pad2d(b4.astype(f32)[:, None], LANE, 1)             # (128, 1)   f32
    w5c = _pad2d(w5.astype(f32), LANE, 1)                      # (128, 1)   f32 (VPU)
    b5s = b5.astype(f32).reshape(1, 1)                         # (1, 1)     f32
    return (w1t, b1c, w2t, b2c, w3t, b3c, w4t, b4c, w5c, b5s)


def net_forward(x, t, prepared, *, tile=DEFAULT_TILE, tanh_dtype=None):
    """x, t: (N, 1) float32.  prepared = prepare_params(params).  Returns (N, 1) f32."""
    if tanh_dtype is None:
        tanh_dtype = _default_tanh_dtype()

    n = x.shape[0]
    tile = _round_up(max(int(tile), LANE), LANE)      # lane-granular tile
    tile_eff = min(tile, _round_up(n, LANE))          # adaptive for small N
    n_pad = _round_up(n, tile_eff)

    # Pack x and t into one lane-dense (2, n_pad) slab (batch lives in lanes).
    xt = jnp.concatenate(
        [x.astype(jnp.float32).reshape(1, n),
         t.astype(jnp.float32).reshape(1, n)], axis=0)          # (2, n)
    xt = jnp.pad(xt, ((0, 0), (0, n_pad - n)))                  # (2, n_pad)

    xt_spec = pl.BlockSpec((2, tile_eff), lambda i: (0, i))
    # Constant index_maps -> weights/biases stay VMEM-resident, never re-DMA'd.
    # (Could additionally set pipeline_mode=pl.Buffered(1) to drop the unused
    #  second buffer; omitted since the saving is ~100-200 KiB.)
    const_specs = [pl.BlockSpec(a.shape, lambda i: (0, 0)) for a in prepared]

    kernel = functools.partial(_mlp_kernel, tanh_dtype=tanh_dtype)

    out = pl.pallas_call(
        kernel,
        out_shape=jax.ShapeDtypeStruct((1, n_pad), jnp.float32),
        grid=(n_pad // tile_eff,),
        in_specs=[xt_spec] + const_specs,
        out_specs=pl.BlockSpec((1, tile_eff), lambda i: (0, i)),
        compiler_params=pltpu.CompilerParams(
            dimension_semantics=("parallel",)),
    )(xt, *prepared)

    return out[0, :n].reshape(n, 1)                             # (N, 1)


def init_params(key):
    """Deterministic init mimicking nn.Linear default (U[-1/sqrt(fan_in), +])."""
    dims = [(2, 80), (80, 80), (80, 80), (80, 40), (40, 1)]
    params = []
    for (fan_in, fan_out) in dims:
        key, kw, kb = jax.random.split(key, 3)
        bound = 1.0 / jnp.sqrt(float(fan_in))
        w = jax.random.uniform(kw, (fan_in, fan_out), jnp.float32, -bound, bound)
        b = jax.random.uniform(kb, (fan_out,), jnp.float32, -bound, bound)
        params.append((w, b))
    return params


def net_forward_ref(x, t, params):
    """Plain-JAX f32 reference for correctness checking."""
    u = jnp.concatenate([x, t], axis=1)
    (w1, b1), (w2, b2), (w3, b3), (w4, b4), (w5, b5) = params
    u = u @ w1 + b1
    u = jnp.tanh(u) @ w2 + b2
    u = jnp.tanh(u) @ w3 + b3
    u = jnp.tanh(u) @ w4 + b4
    u = jnp.tanh(u) @ w5 + b5
    return u


if __name__ == "__main__":
    key = jax.random.PRNGKey(0)
    key, kx, kt = jax.random.split(key, 3)

    params = init_params(key)
    prepared = prepare_params(params)

    # Small shape consistent with the module: batch=8 of (x, t) scalars.
    # Adaptive tile -> a single 128-lane grid step (no 512-row padding waste).
    N = 8
    x = jax.random.normal(kx, (N, 1), jnp.float32)
    t = jax.random.normal(kt, (N, 1), jnp.float32)

    out = jax.block_until_ready(net_forward(x, t, prepared))
    ref = net_forward_ref(x, t, params)
    assert out.shape == (N, 1)
    # bf16 MXU operands (f32 accumulation) + bf16 tanh on v6e/v7x -> compare
    # against the f32 reference with a bf16-appropriate tolerance.
    assert jnp.allclose(out, ref, atol=5e-2, rtol=5e-2), (out, ref)

    # Second check: multi-step grid + non-multiple batch (exercises tiling path).
    key, kx2, kt2 = jax.random.split(key, 3)
    N2 = 517
    x2 = jax.random.normal(kx2, (N2, 1), jnp.float32)
    t2 = jax.random.normal(kt2, (N2, 1), jnp.float32)
    out2 = jax.block_until_ready(net_forward(x2, t2, prepared, tile=256))
    ref2 = net_forward_ref(x2, t2, params)
    assert out2.shape == (N2, 1)
    assert jnp.allclose(out2, ref2, atol=5e-2, rtol=5e-2)

    print("KERNEL_OK")
</pallas_src>

<mosaic_0001>
module attributes {stable_mosaic.version = 11 : i64} {
  func.func @_mlp_kernel(%arg0: i32, %arg1: memref<2x128xf32, #tpu.memory_space<vmem>>, %arg2: memref<128x2xf32, #tpu.memory_space<vmem>>, %arg3: memref<128x1xf32, #tpu.memory_space<vmem>>, %arg4: memref<128x128xbf16, #tpu.memory_space<vmem>>, %arg5: memref<128x1xf32, #tpu.memory_space<vmem>>, %arg6: memref<128x128xbf16, #tpu.memory_space<vmem>>, %arg7: memref<128x1xf32, #tpu.memory_space<vmem>>, %arg8: memref<128x128xbf16, #tpu.memory_space<vmem>>, %arg9: memref<128x1xf32, #tpu.memory_space<vmem>>, %arg10: memref<128x1xf32, #tpu.memory_space<vmem>>, %arg11: memref<1x1xf32, #tpu.memory_space<vmem>>, %arg12: memref<1x128xf32, #tpu.memory_space<vmem>>) attributes {dimension_semantics = [#tpu.dimension_semantics<parallel>], iteration_bounds = array<i64: 1>, scalar_prefetch = 0 : i64, scratch_operands = 0 : i64, tpu.core_type = #tpu.core_type<tc>, window_params = [{transform_indices = @transform_0, window_bounds = array<i64: 2, 128>}, {pipeline_mode = #tpu.pipeline_mode<synchronous>, transform_indices = @transform_1, window_bounds = array<i64: 128, 2>}, {pipeline_mode = #tpu.pipeline_mode<synchronous>, transform_indices = @transform_2, window_bounds = array<i64: 128, 1>}, {pipeline_mode = #tpu.pipeline_mode<synchronous>, transform_indices = @transform_3, window_bounds = array<i64: 128, 128>}, {pipeline_mode = #tpu.pipeline_mode<synchronous>, transform_indices = @transform_4, window_bounds = array<i64: 128, 1>}, {pipeline_mode = #tpu.pipeline_mode<synchronous>, transform_indices = @transform_5, window_bounds = array<i64: 128, 128>}, {pipeline_mode = #tpu.pipeline_mode<synchronous>, transform_indices = @transform_6, window_bounds = array<i64: 128, 1>}, {pipeline_mode = #tpu.pipeline_mode<synchronous>, transform_indices = @transform_7, window_bounds = array<i64: 128, 128>}, {pipeline_mode = #tpu.pipeline_mode<synchronous>, transform_indices = @transform_8, window_bounds = array<i64: 128, 1>}, {pipeline_mode = #tpu.pipeline_mode<synchronous>, transform_indices = @transform_9, window_bounds = array<i64: 128, 1>}, {pipeline_mode = #tpu.pipeline_mode<synchronous>, transform_indices = @transform_10, window_bounds = array<i64: 1, 1>}, {transform_indices = @transform_11, window_bounds = array<i64: 1, 128>}]} {
    %c0 = arith.constant 0 : index
    %c0_0 = arith.constant 0 : index
    %0 = vector.load %arg1[%c0, %c0_0] : memref<2x128xf32, #tpu.memory_space<vmem>>, vector<1x128xf32>
    %c1 = arith.constant 1 : index
    %c0_1 = arith.constant 0 : index
    %1 = vector.load %arg1[%c1, %c0_1] : memref<2x128xf32, #tpu.memory_space<vmem>>, vector<1x128xf32>
    %c0_2 = arith.constant 0 : index
    %c0_3 = arith.constant 0 : index
    %2 = vector.load %arg2[%c0_2, %c0_3] : memref<128x2xf32, #tpu.memory_space<vmem>>, vector<128x1xf32>
    %3 = vector.broadcast %2 : vector<128x1xf32> to vector<128x128xf32>
    %4 = vector.broadcast %0 : vector<1x128xf32> to vector<128x128xf32>
    %5 = arith.mulf %3, %4 : vector<128x128xf32>
    %c0_4 = arith.constant 0 : index
    %c1_5 = arith.constant 1 : index
    %6 = vector.load %arg2[%c0_4, %c1_5] : memref<128x2xf32, #tpu.memory_space<vmem>>, vector<128x1xf32>
    %7 = vector.broadcast %6 : vector<128x1xf32> to vector<128x128xf32>
    %8 = vector.broadcast %1 : vector<1x128xf32> to vector<128x128xf32>
    %9 = arith.mulf %7, %8 : vector<128x128xf32>
    %10 = arith.addf %5, %9 : vector<128x128xf32>
    %c0_6 = arith.constant 0 : index
    %c0_7 = arith.constant 0 : index
    %11 = vector.load %arg3[%c0_6, %c0_7] : memref<128x1xf32, #tpu.memory_space<vmem>>, vector<128x1xf32>
    %12 = vector.broadcast %11 : vector<128x1xf32> to vector<128x128xf32>
    %13 = arith.addf %10, %12 : vector<128x128xf32>
    %c0_8 = arith.constant 0 : index
    %c0_9 = arith.constant 0 : index
    %14 = vector.load %arg4[%c0_8, %c0_9] : memref<128x128xbf16, #tpu.memory_space<vmem>>, vector<128x128xbf16>
    %15 = math.tanh %13 : vector<128x128xf32>
    %16 = arith.truncf %15 : vector<128x128xf32> to vector<128x128xbf16>
    %cst = arith.constant dense<0.000000e+00> : vector<128x128xf32>
    %17 = tpu.matmul %14, %16, %cst {dimension_numbers = #tpu.dot_dimension_numbers<[1], [0], [0], [1], [0, 0, 1, 1], [], []>} : vector<128x128xbf16>, vector<128x128xbf16>, vector<128x128xf32> -> vector<128x128xf32>
    %c0_10 = arith.constant 0 : index
    %c0_11 = arith.constant 0 : index
    %18 = vector.load %arg5[%c0_10, %c0_11] : memref<128x1xf32, #tpu.memory_space<vmem>>, vector<128x1xf32>
    %19 = vector.broadcast %18 : vector<128x1xf32> to vector<128x128xf32>
    %20 = arith.addf %17, %19 : vector<128x128xf32>
    %c0_12 = arith.constant 0 : index
    %c0_13 = arith.constant 0 : index
    %21 = vector.load %arg6[%c0_12, %c0_13] : memref<128x128xbf16, #tpu.memory_space<vmem>>, vector<128x128xbf16>
    %22 = math.tanh %20 : vector<128x128xf32>
    %23 = arith.truncf %22 : vector<128x128xf32> to vector<128x128xbf16>
    %cst_14 = arith.constant dense<0.000000e+00> : vector<128x128xf32>
    %24 = tpu.matmul %21, %23, %cst_14 {dimension_numbers = #tpu.dot_dimension_numbers<[1], [0], [0], [1], [0, 0, 1, 1], [], []>} : vector<128x128xbf16>, vector<128x128xbf16>, vector<128x128xf32> -> vector<128x128xf32>
    %c0_15 = arith.constant 0 : index
    %c0_16 = arith.constant 0 : index
    %25 = vector.load %arg7[%c0_15, %c0_16] : memref<128x1xf32, #tpu.memory_space<vmem>>, vector<128x1xf32>
    %26 = vector.broadcast %25 : vector<128x1xf32> to vector<128x128xf32>
    %27 = arith.addf %24, %26 : vector<128x128xf32>
    %c0_17 = arith.constant 0 : index
    %c0_18 = arith.constant 0 : index
    %28 = vector.load %arg8[%c0_17, %c0_18] : memref<128x128xbf16, #tpu.memory_space<vmem>>, vector<128x128xbf16>
    %29 = math.tanh %27 : vector<128x128xf32>
    %30 = arith.truncf %29 : vector<128x128xf32> to vector<128x128xbf16>
    %cst_19 = arith.constant dense<0.000000e+00> : vector<128x128xf32>
    %31 = tpu.matmul %28, %30, %cst_19 {dimension_numbers = #tpu.dot_dimension_numbers<[1], [0], [0], [1], [0, 0, 1, 1], [], []>} : vector<128x128xbf16>, vector<128x128xbf16>, vector<128x128xf32> -> vector<128x128xf32>
    %c0_20 = arith.constant 0 : index
    %c0_21 = arith.constant 0 : index
    %32 = vector.load %arg9[%c0_20, %c0_21] : memref<128x1xf32, #tpu.memory_space<vmem>>, vector<128x1xf32>
    %33 = vector.broadcast %32 : vector<128x1xf32> to vector<128x128xf32>
    %34 = arith.addf %31, %33 : vector<128x128xf32>
    %35 = math.tanh %34 : vector<128x128xf32>
    %c0_22 = arith.constant 0 : index
    %c0_23 = arith.constant 0 : index
    %36 = vector.load %arg10[%c0_22, %c0_23] : memref<128x1xf32, #tpu.memory_space<vmem>>, vector<128x1xf32>
    %37 = vector.broadcast %36 : vector<128x1xf32> to vector<128x128xf32>
    %38 = arith.mulf %35, %37 : vector<128x128xf32>
    %cst_24 = arith.constant dense<0.000000e+00> : vector<128xf32>
    %39 = vector.multi_reduction <add>, %38, %cst_24 [0] : vector<128x128xf32> to vector<128xf32>
    %40 = vector.shape_cast %39 : vector<128xf32> to vector<1x128xf32>
    %c0_25 = arith.constant 0 : index
    %c0_26 = arith.constant 0 : index
    %41 = vector.load %arg11[%c0_25, %c0_26] : memref<1x1xf32, #tpu.memory_space<vmem>>, vector<1x1xf32>
    %42 = vector.broadcast %41 : vector<1x1xf32> to vector<1x128xf32>
    %43 = arith.addf %40, %42 : vector<1x128xf32>
    %c0_27 = arith.constant 0 : index
    %c0_28 = arith.constant 0 : index
    %44 = vector.load %arg12[%c0_27, %c0_28] : memref<1x128xf32, #tpu.memory_space<vmem>>, vector<1x128xf32>
    tpu.vector_store %arg12[%c0_27, %c0_28], %43 {strides = array<i32>} : memref<1x128xf32, #tpu.memory_space<vmem>>, vector<1x128xf32>,
    return
  }
  func.func @transform_0(%arg0: i32) -> (i32, i32) {
    %c0_i32 = arith.constant 0 : i32
    %c0_i32_0 = arith.constant 0 : i32
    return %c0_i32, %arg0 : i32, i32
  }
  func.func @transform_1(%arg0: i32) -> (i32, i32) {
    %c0_i32 = arith.constant 0 : i32
    %c0_i32_0 = arith.constant 0 : i32
    %c0_i32_1 = arith.constant 0 : i32
    return %c0_i32, %c0_i32_0 : i32, i32
  }
  func.func @transform_2(%arg0: i32) -> (i32, i32) {
    %c0_i32 = arith.constant 0 : i32
    %c0_i32_0 = arith.constant 0 : i32
    %c0_i32_1 = arith.constant 0 : i32
    return %c0_i32, %c0_i32_0 : i32, i32
  }
  func.func @transform_3(%arg0: i32) -> (i32, i32) {
    %c0_i32 = arith.constant 0 : i32
    %c0_i32_0 = arith.constant 0 : i32
    %c0_i32_1 = arith.constant 0 : i32
    return %c0_i32, %c0_i32_0 : i32, i32
  }
  func.func @transform_4(%arg0: i32) -> (i32, i32) {
    %c0_i32 = arith.constant 0 : i32
    %c0_i32_0 = arith.constant 0 : i32
    %c0_i32_1 = arith.constant 0 : i32
    return %c0_i32, %c0_i32_0 : i32, i32
  }
  func.func @transform_5(%arg0: i32) -> (i32, i32) {
    %c0_i32 = arith.constant 0 : i32
    %c0_i32_0 = arith.constant 0 : i32
    %c0_i32_1 = arith.constant 0 : i32
    return %c0_i32, %c0_i32_0 : i32, i32
  }
  func.func @transform_6(%arg0: i32) -> (i32, i32) {
    %c0_i32 = arith.constant 0 : i32
    %c0_i32_0 = arith.constant 0 : i32
    %c0_i32_1 = arith.constant 0 : i32
    return %c0_i32, %c0_i32_0 : i32, i32
  }
  func.func @transform_7(%arg0: i32) -> (i32, i32) {
    %c0_i32 = arith.constant 0 : i32
    %c0_i32_0 = arith.constant 0 : i32
    %c0_i32_1 = arith.constant 0 : i32
    return %c0_i32, %c0_i32_0 : i32, i32
  }
  func.func @transform_8(%arg0: i32) -> (i32, i32) {
    %c0_i32 = arith.constant 0 : i32
    %c0_i32_0 = arith.constant 0 : i32
    %c0_i32_1 = arith.constant 0 : i32
    return %c0_i32, %c0_i32_0 : i32, i32
  }
  func.func @transform_9(%arg0: i32) -> (i32, i32) {
    %c0_i32 = arith.constant 0 : i32
    %c0_i32_0 = arith.constant 0 : i32
    %c0_i32_1 = arith.constant 0 : i32
    return %c0_i32, %c0_i32_0 : i32, i32
  }
  func.func @transform_10(%arg0: i32) -> (i32, i32) {
    %c0_i32 = arith.constant 0 : i32
    %c0_i32_0 = arith.constant 0 : i32
    %c0_i32_1 = arith.constant 0 : i32
    return %c0_i32, %c0_i32_0 : i32, i32
  }
  func.func @transform_11(%arg0: i32) -> (i32, i32) {
    %c0_i32 = arith.constant 0 : i32
    %c0_i32_0 = arith.constant 0 : i32
    return %c0_i32, %arg0 : i32, i32
  }
}

</mosaic_0001>

<llo_original>
// kernel: tpu_custom_call.1
$region0: #{tpu_custom_call.1}
  #allocation0 [shape = 'u32[]', space=smem, size = 0x4, offset = 0x4, fixed_abs, tag = 'smem constant byte address 0x4 - core index']
  #allocation1 [shape = 'u32[72,128]{1,0:T(1,128)}', space=vmem, size = 0x9000, scoped, tag = 'internal scratch']
  #allocation2 [shape = 'f32[1,1]{1,0:T(1,128)S(1)}', space=vmem, size = 0x200, scoped, tag = 'scoped memory for tpu_custom_call.1']
  %s0 = inlined_call_operand.vmem [shape: f32[2,128], index: 0, kind: input, shape index: {}]
  %s1 = inlined_call_operand.vmem [shape: f32[128,2], index: 1, kind: input, shape index: {}]
  %s2 = inlined_call_operand.vmem [shape: f32[128,1], index: 2, kind: input, shape index: {}]
  %s3 = inlined_call_operand.vmem [shape: bf16[128,128], index: 3, kind: input, shape index: {}]
  %s4 = inlined_call_operand.vmem [shape: f32[128,1], index: 4, kind: input, shape index: {}]
  %s5 = inlined_call_operand.vmem [shape: bf16[128,128], index: 5, kind: input, shape index: {}]
  %s6 = inlined_call_operand.vmem [shape: f32[128,1], index: 6, kind: input, shape index: {}]
  %s7 = inlined_call_operand.vmem [shape: bf16[128,128], index: 7, kind: input, shape index: {}]
  %s8 = inlined_call_operand.vmem [shape: f32[128,1], index: 8, kind: input, shape index: {}]
  %s9 = inlined_call_operand.vmem [shape: f32[128,1], index: 9, kind: input, shape index: {}]
  %s10 = inlined_call_operand.<no memory space> [shape: f32[1,1], index: 10, kind: input, shape index: {}]
  %s11 = inlined_call_operand.hbm [shape: f32[1,128], index: 11, kind: output, shape index: {}]
  %s12 = sld [smem:[#allocation0]]
  $region54: #{tpu_custom_call.1} parent=0
    _
  %s14 = ssub.s32 1, %s12
  %s15 = scalar_select 0, %s14, %s12
  %v16 = vstv %s10
  %17 = vst [vmem:[#allocation2] sm:$0x1] %v16
  $region1: #{tpu_custom_call.1} parent=0
    #allocation3 [shape = 'u8[512]{0}', space=vmem, size = 0x400, scoped, tag = 'output window, operand 0, single buffered']
    #allocation4 [shape = 's32[1]{0}', space=sflag, size = 0x4, scoped, tag = 'scoped memory for tpu_custom_call.1']
    %18 = vsyncpa [#allocation4], 0
    // Predicated region
    $region2: #{tpu_custom_call.1} parent=1 // pred_check
      _
    $region3: #{tpu_custom_call.1} parent=1 // pred_check_branch
      %20 = sbr.rel (0) target = $region5
    $region4: #{tpu_custom_call.1} parent=1 // pred_region
      _
    $region5: #{tpu_custom_call.1} parent=1 // pred_fallthru
      _
    // Predicated region
    $region6: #{tpu_custom_call.1} parent=1 // pred_check
      _
    $region7: #{tpu_custom_call.1} parent=1 // pred_check_branch
      %22 = sbr.rel (0) target = $region9
    $region8: #{tpu_custom_call.1} parent=1 // pred_region
      _
    $region9: #{tpu_custom_call.1} parent=1 // pred_fallthru
      _
    // Predicated region
    $region10: #{tpu_custom_call.1} parent=1 // pred_check
      _
    $region11: #{tpu_custom_call.1} parent=1 // pred_check_branch
      %24 = sbr.rel (0) target = $region13
    $region12: #{tpu_custom_call.1} parent=1 // pred_region
      _
    $region13: #{tpu_custom_call.1} parent=1 // pred_fallthru
      _
    // Predicated region
    $region14: #{tpu_custom_call.1} parent=1 // pred_check
      _
    $region15: #{tpu_custom_call.1} parent=1 // pred_check_branch
      %26 = sbr.rel (0) target = $region17
    $region16: #{tpu_custom_call.1} parent=1 // pred_region
      _
    $region17: #{tpu_custom_call.1} parent=1 // pred_fallthru
      _
    // Predicated region
    $region18: #{tpu_custom_call.1} parent=1 // pred_check
      _
    $region19: #{tpu_custom_call.1} parent=1 // pred_check_branch
      %28 = sbr.rel (0) target = $region21
    $region20: #{tpu_custom_call.1} parent=1 // pred_region
      _
    $region21: #{tpu_custom_call.1} parent=1 // pred_fallthru
      _
    // Predicated region
    $region22: #{tpu_custom_call.1} parent=1 // pred_check
      _
    $region23: #{tpu_custom_call.1} parent=1 // pred_check_branch
      %30 = sbr.rel (0) target = $region25
    $region24: #{tpu_custom_call.1} parent=1 // pred_region
      _
    $region25: #{tpu_custom_call.1} parent=1 // pred_fallthru
      _
    // Predicated region
    $region26: #{tpu_custom_call.1} parent=1 // pred_check
      _
    $region27: #{tpu_custom_call.1} parent=1 // pred_check_branch
      %32 = sbr.rel (0) target = $region29
    $region28: #{tpu_custom_call.1} parent=1 // pred_region
      _
    $region29: #{tpu_custom_call.1} parent=1 // pred_fallthru
      _
    // Predicated region
    $region30: #{tpu_custom_call.1} parent=1 // pred_check
      _
    $region31: #{tpu_custom_call.1} parent=1 // pred_check_branch
      %34 = sbr.rel (0) target = $region33
    $region32: #{tpu_custom_call.1} parent=1 // pred_region
      _
    $region33: #{tpu_custom_call.1} parent=1 // pred_fallthru
      _
    // Predicated region
    $region34: #{tpu_custom_call.1} parent=1 // pred_check
      _
    $region35: #{tpu_custom_call.1} parent=1 // pred_check_branch
      %36 = sbr.rel (0) target = $region37
    $region36: #{tpu_custom_call.1} parent=1 // pred_region
      _
    $region37: #{tpu_custom_call.1} parent=1 // pred_fallthru
      _
    // Predicated region
    $region38: #{tpu_custom_call.1} parent=1 // pred_check
      _
    $region39: #{tpu_custom_call.1} parent=1 // pred_check_branch
      %38 = sbr.rel (0) target = $region41
    $region40: #{tpu_custom_call.1} parent=1 // pred_region
      _
    $region41: #{tpu_custom_call.1} parent=1 // pred_fallthru
      _
    // Predicated region
    $region42: #{tpu_custom_call.1} parent=1 // pred_check
      _
    $region43: #{tpu_custom_call.1} parent=1 // pred_check_branch
      %40 = sbr.rel (0) target = $region45
    $region44: #{tpu_custom_call.1} parent=1 // pred_region
      _
    $region45: #{tpu_custom_call.1} parent=1 // pred_fallthru
      _
    %v41 = vld [vmem:[%s0] sm:$0x1]
    %v42 = vld [vmem:[%s0 + $0x1] sm:$0x1]
    %v43 = vld [vmem:[%s1] sm:$0xff]
    %v44 = vld [vmem:[%s1 + $0x8] sm:$0xff]
    %v45 = vld [vmem:[%s1 + $0x10] sm:$0xff]
    %v46 = vld [vmem:[%s1 + $0x18] sm:$0xff]
    %v47 = vld [vmem:[%s1 + $0x20] sm:$0xff]
    %v48 = vld [vmem:[%s1 + $0x28] sm:$0xff]
    %v49 = vld [vmem:[%s1 + $0x30] sm:$0xff]
    %v50 = vld [vmem:[%s1 + $0x38] sm:$0xff]
    %v51 = vld [vmem:[%s1 + $0x40] sm:$0xff]
    %v52 = vld [vmem:[%s1 + $0x48] sm:$0xff]
    %v53 = vld [vmem:[%s1 + $0x50] sm:$0xff]
    %v54 = vld [vmem:[%s1 + $0x58] sm:$0xff]
    %v55 = vld [vmem:[%s1 + $0x60] sm:$0xff]
    %v56 = vld [vmem:[%s1 + $0x68] sm:$0xff]
    %v57 = vld [vmem:[%s1 + $0x70] sm:$0xff]
    %v58 = vld [vmem:[%s1 + $0x78] sm:$0xff]
    %60 = vset.pattern.permute.xlu0 0
    %61 = vperm.xlu0 %60, %v43
    %v62 = vpop.permute.xlu0 %61
    %65 = vset.pattern.permute.xlu0 0
    %66 = vperm.xlu0 %65, %v44
    %v67 = vpop.permute.xlu0 %66
    %70 = vset.pattern.permute.xlu0 0
    %71 = vperm.xlu0 %70, %v45
    %v72 = vpop.permute.xlu0 %71
    %75 = vset.pattern.permute.xlu0 0
    %76 = vperm.xlu0 %75, %v46
    %v77 = vpop.permute.xlu0 %76
    %80 = vset.pattern.permute.xlu0 0
    %81 = vperm.xlu0 %80, %v47
    %v82 = vpop.permute.xlu0 %81
    %85 = vset.pattern.permute.xlu0 0
    %86 = vperm.xlu0 %85, %v48
    %v87 = vpop.permute.xlu0 %86
    %90 = vset.pattern.permute.xlu0 0
    %91 = vperm.xlu0 %90, %v49
    %v92 = vpop.permute.xlu0 %91
    %95 = vset.pattern.permute.xlu0 0
    %96 = vperm.xlu0 %95, %v50
    %v97 = vpop.permute.xlu0 %96
    %100 = vset.pattern.permute.xlu0 0
    %101 = vperm.xlu0 %100, %v51
    %v102 = vpop.permute.xlu0 %101
    %105 = vset.pattern.permute.xlu0 0
    %106 = vperm.xlu0 %105, %v52
    %v107 = vpop.permute.xlu0 %106
    %110 = vset.pattern.permute.xlu0 0
    %111 = vperm.xlu0 %110, %v53
    %v112 = vpop.permute.xlu0 %111
    %115 = vset.pattern.permute.xlu0 0
    %116 = vperm.xlu0 %115, %v54
    %v117 = vpop.permute.xlu0 %116
    %120 = vset.pattern.permute.xlu0 0
    %121 = vperm.xlu0 %120, %v55
    %v122 = vpop.permute.xlu0 %121
    %125 = vset.pattern.permute.xlu0 0
    %126 = vperm.xlu0 %125, %v56
    %v127 = vpop.permute.xlu0 %126
    %130 = vset.pattern.permute.xlu0 0
    %131 = vperm.xlu0 %130, %v57
    %v132 = vpop.permute.xlu0 %131
    %135 = vset.pattern.permute.xlu0 0
    %136 = vperm.xlu0 %135, %v58
    %v137 = vpop.permute.xlu0 %136
    %v139 = vperm.slane %v41, 0
    %v140 = vmul.f32 %v62, %v139
    %v141 = vmul.f32 %v67, %v139
    %v142 = vmul.f32 %v72, %v139
    %v143 = vmul.f32 %v77, %v139
    %v144 = vmul.f32 %v82, %v139
    %v145 = vmul.f32 %v87, %v139
    %v146 = vmul.f32 %v92, %v139
    %v147 = vmul.f32 %v97, %v139
    %v148 = vmul.f32 %v102, %v139
    %v149 = vmul.f32 %v107, %v139
    %v150 = vmul.f32 %v112, %v139
    %v151 = vmul.f32 %v117, %v139
    %v152 = vmul.f32 %v122, %v139
    %v153 = vmul.f32 %v127, %v139
    %v154 = vmul.f32 %v132, %v139
    %v155 = vmul.f32 %v137, %v139
    %156 = vset.pattern.permute.xlu0 1
    %157 = vperm.xlu0 %156, %v43
    %v158 = vpop.permute.xlu0 %157
    %160 = vset.pattern.permute.xlu0 1
    %161 = vperm.xlu0 %160, %v44
    %v162 = vpop.permute.xlu0 %161
    %164 = vset.pattern.permute.xlu0 1
    %165 = vperm.xlu0 %164, %v45
    %v166 = vpop.permute.xlu0 %165
    %168 = vset.pattern.permute.xlu0 1
    %169 = vperm.xlu0 %168, %v46
    %v170 = vpop.permute.xlu0 %169
    %172 = vset.pattern.permute.xlu0 1
    %173 = vperm.xlu0 %172, %v47
    %v174 = vpop.permute.xlu0 %173
    %176 = vset.pattern.permute.xlu0 1
    %177 = vperm.xlu0 %176, %v48
    %v178 = vpop.permute.xlu0 %177
    %180 = vset.pattern.permute.xlu0 1
    %181 = vperm.xlu0 %180, %v49
    %v182 = vpop.permute.xlu0 %181
    %184 = vset.pattern.permute.xlu0 1
    %185 = vperm.xlu0 %184, %v50
    %v186 = vpop.permute.xlu0 %185
    %188 = vset.pattern.permute.xlu0 1
    %189 = vperm.xlu0 %188, %v51
    %v190 = vpop.permute.xlu0 %189
    %192 = vset.pattern.permute.xlu0 1
    %193 = vperm.xlu0 %192, %v52
    %v194 = vpop.permute.xlu0 %193
    %196 = vset.pattern.permute.xlu0 1
    %197 = vperm.xlu0 %196, %v53
    %v198 = vpop.permute.xlu0 %197
    %200 = vset.pattern.permute.xlu0 1
    %201 = vperm.xlu0 %200, %v54
    %v202 = vpop.permute.xlu0 %201
    %204 = vset.pattern.permute.xlu0 1
    %205 = vperm.xlu0 %204, %v55
    %v206 = vpop.permute.xlu0 %205
    %208 = vset.pattern.permute.xlu0 1
    %209 = vperm.xlu0 %208, %v56
    %v210 = vpop.permute.xlu0 %209
    %212 = vset.pattern.permute.xlu0 1
    %213 = vperm.xlu0 %212, %v57
    %v214 = vpop.permute.xlu0 %213
    %216 = vset.pattern.permute.xlu0 1
    %217 = vperm.xlu0 %216, %v58
    %v218 = vpop.permute.xlu0 %217
    %v220 = vperm.slane %v42, 0
    %v221 = vmul.f32 %v158, %v220
    %v222 = vmul.f32 %v162, %v220
    %v223 = vmul.f32 %v166, %v220
    %v224 = vmul.f32 %v170, %v220
    %v225 = vmul.f32 %v174, %v220
    %v226 = vmul.f32 %v178, %v220
    %v227 = vmul.f32 %v182, %v220
    %v228 = vmul.f32 %v186, %v220
    %v229 = vmul.f32 %v190, %v220
    %v230 = vmul.f32 %v194, %v220
    %v231 = vmul.f32 %v198, %v220
    %v232 = vmul.f32 %v202, %v220
    %v233 = vmul.f32 %v206, %v220
    %v234 = vmul.f32 %v210, %v220
    %v235 = vmul.f32 %v214, %v220
    %v236 = vmul.f32 %v218, %v220
    %v237 = vadd.f32 %v140, %v221
    %v238 = vadd.f32 %v141, %v222
    %v239 = vadd.f32 %v142, %v223
    %v240 = vadd.f32 %v143, %v224
    %v241 = vadd.f32 %v144, %v225
    %v242 = vadd.f32 %v145, %v226
    %v243 = vadd.f32 %v146, %v227
    %v244 = vadd.f32 %v147, %v228
    %v245 = vadd.f32 %v148, %v229
    %v246 = vadd.f32 %v149, %v230
    %v247 = vadd.f32 %v150, %v231
    %v248 = vadd.f32 %v151, %v232
    %v249 = vadd.f32 %v152, %v233
    %v250 = vadd.f32 %v153, %v234
    %v251 = vadd.f32 %v154, %v235
    %v252 = vadd.f32 %v155, %v236
    %v253 = vld [vmem:[%s2] sm:$0xff]
    %v254 = vld [vmem:[%s2 + $0x8] sm:$0xff]
    %v255 = vld [vmem:[%s2 + $0x10] sm:$0xff]
    %v256 = vld [vmem:[%s2 + $0x18] sm:$0xff]
    %v257 = vld [vmem:[%s2 + $0x20] sm:$0xff]
    %v258 = vld [vmem:[%s2 + $0x28] sm:$0xff]
    %v259 = vld [vmem:[%s2 + $0x30] sm:$0xff]
    %v260 = vld [vmem:[%s2 + $0x38] sm:$0xff]
    %v261 = vld [vmem:[%s2 + $0x40] sm:$0xff]
    %v262 = vld [vmem:[%s2 + $0x48] sm:$0xff]
    %v263 = vld [vmem:[%s2 + $0x50] sm:$0xff]
    %v264 = vld [vmem:[%s2 + $0x58] sm:$0xff]
    %v265 = vld [vmem:[%s2 + $0x60] sm:$0xff]
    %v266 = vld [vmem:[%s2 + $0x68] sm:$0xff]
    %v267 = vld [vmem:[%s2 + $0x70] sm:$0xff]
    %v268 = vld [vmem:[%s2 + $0x78] sm:$0xff]
    %270 = vset.pattern.permute.xlu0 0
    %271 = vperm.xlu0 %270, %v253
    %v272 = vpop.permute.xlu0 %271
    %275 = vset.pattern.permute.xlu0 0
    %276 = vperm.xlu0 %275, %v254
    %v277 = vpop.permute.xlu0 %276
    %280 = vset.pattern.permute.xlu0 0
    %281 = vperm.xlu0 %280, %v255
    %v282 = vpop.permute.xlu0 %281
    %285 = vset.pattern.permute.xlu0 0
    %286 = vperm.xlu0 %285, %v256
    %v287 = vpop.permute.xlu0 %286
    %290 = vset.pattern.permute.xlu0 0
    %291 = vperm.xlu0 %290, %v257
    %v292 = vpop.permute.xlu0 %291
    %295 = vset.pattern.permute.xlu0 0
    %296 = vperm.xlu0 %295, %v258
    %v297 = vpop.permute.xlu0 %296
    %300 = vset.pattern.permute.xlu0 0
    %301 = vperm.xlu0 %300, %v259
    %v302 = vpop.permute.xlu0 %301
    %305 = vset.pattern.permute.xlu0 0
    %306 = vperm.xlu0 %305, %v260
    %v307 = vpop.permute.xlu0 %306
    %310 = vset.pattern.permute.xlu0 0
    %311 = vperm.xlu0 %310, %v261
    %v312 = vpop.permute.xlu0 %311
    %315 = vset.pattern.permute.xlu0 0
    %316 = vperm.xlu0 %315, %v262
    %v317 = vpop.permute.xlu0 %316
    %320 = vset.pattern.permute.xlu0 0
    %321 = vperm.xlu0 %320, %v263
    %v322 = vpop.permute.xlu0 %321
    %325 = vset.pattern.permute.xlu0 0
    %326 = vperm.xlu0 %325, %v264
    %v327 = vpop.permute.xlu0 %326
    %330 = vset.pattern.permute.xlu0 0
    %331 = vperm.xlu0 %330, %v265
    %v332 = vpop.permute.xlu0 %331
    %335 = vset.pattern.permute.xlu0 0
    %336 = vperm.xlu0 %335, %v266
    %v337 = vpop.permute.xlu0 %336
    %340 = vset.pattern.permute.xlu0 0
    %341 = vperm.xlu0 %340, %v267
    %v342 = vpop.permute.xlu0 %341
    %345 = vset.pattern.permute.xlu0 0
    %346 = vperm.xlu0 %345, %v268
    %v347 = vpop.permute.xlu0 %346
    %v349 = vadd.f32 %v237, %v272
    %v350 = vadd.f32 %v238, %v277
    %v351 = vadd.f32 %v239, %v282
    %v352 = vadd.f32 %v240, %v287
    %v353 = vadd.f32 %v241, %v292
    %v354 = vadd.f32 %v242, %v297
    %v355 = vadd.f32 %v243, %v302
    %v356 = vadd.f32 %v244, %v307
    %v357 = vadd.f32 %v245, %v312
    %v358 = vadd.f32 %v246, %v317
    %v359 = vadd.f32 %v247, %v322
    %v360 = vadd.f32 %v248, %v327
    %v361 = vadd.f32 %v249, %v332
    %v362 = vadd.f32 %v250, %v337
    %v363 = vadd.f32 %v251, %v342
    %v364 = vadd.f32 %v252, %v347
    %v365 = vld [vmem:[%s3] sm:$0xf]
    %v366 = vld [vmem:[%s3 + $0x4] sm:$0xf]
    %v367 = vld [vmem:[%s3 + $0x8] sm:$0xf]
    %v368 = vld [vmem:[%s3 + $0xc] sm:$0xf]
    %v369 = vld [vmem:[%s3 + $0x10] sm:$0xf]
    %v370 = vld [vmem:[%s3 + $0x14] sm:$0xf]
    %v371 = vld [vmem:[%s3 + $0x18] sm:$0xf]
    %v372 = vld [vmem:[%s3 + $0x1c] sm:$0xf]
    %v373 = vld [vmem:[%s3 + $0x20] sm:$0xf]
    %v374 = vld [vmem:[%s3 + $0x24] sm:$0xf]
    %v375 = vld [vmem:[%s3 + $0x28] sm:$0xf]
    %v376 = vld [vmem:[%s3 + $0x2c] sm:$0xf]
    %v377 = vld [vmem:[%s3 + $0x30] sm:$0xf]
    %v378 = vld [vmem:[%s3 + $0x34] sm:$0xf]
    %v379 = vld [vmem:[%s3 + $0x38] sm:$0xf]
    %v380 = vld [vmem:[%s3 + $0x3c] sm:$0xf]
    %v381 = vtanh.pop %v349
    %v382 = vtanh.pop %v350
    %v383 = vtanh.pop %v351
    %v384 = vtanh.pop %v352
    %v385 = vtanh.pop %v353
    %v386 = vtanh.pop %v354
    %v387 = vtanh.pop %v355
    %v388 = vtanh.pop %v356
    %v389 = vtanh.pop %v357
    %v390 = vtanh.pop %v358
    %v391 = vtanh.pop %v359
    %v392 = vtanh.pop %v360
    %v393 = vtanh.pop %v361
    %v394 = vtanh.pop %v362
    %v395 = vtanh.pop %v363
    %v396 = vtanh.pop %v364
    %v397 = vpack.c.bf16 %v382, %v381
    %v398 = vpack.c.bf16 %v384, %v383
    %v399 = vpack.c.bf16 %v386, %v385
    %v400 = vpack.c.bf16 %v388, %v387
    %v401 = vpack.c.bf16 %v390, %v389
    %v402 = vpack.c.bf16 %v392, %v391
    %v403 = vpack.c.bf16 %v394, %v393
    %v404 = vpack.c.bf16 %v396, %v395
    %v405 = vld [vmem:[%s4] sm:$0xff]
    %v406 = vld [vmem:[%s4 + $0x8] sm:$0xff]
    %v407 = vld [vmem:[%s4 + $0x10] sm:$0xff]
    %v408 = vld [vmem:[%s4 + $0x18] sm:$0xff]
    %v409 = vld [vmem:[%s4 + $0x20] sm:$0xff]
    %v410 = vld [vmem:[%s4 + $0x28] sm:$0xff]
    %v411 = vld [vmem:[%s4 + $0x30] sm:$0xff]
    %v412 = vld [vmem:[%s4 + $0x38] sm:$0xff]
    %v413 = vld [vmem:[%s4 + $0x40] sm:$0xff]
    %v414 = vld [vmem:[%s4 + $0x48] sm:$0xff]
    %v415 = vld [vmem:[%s4 + $0x50] sm:$0xff]
    %v416 = vld [vmem:[%s4 + $0x58] sm:$0xff]
    %v417 = vld [vmem:[%s4 + $0x60] sm:$0xff]
    %v418 = vld [vmem:[%s4 + $0x68] sm:$0xff]
    %v419 = vld [vmem:[%s4 + $0x70] sm:$0xff]
    %v420 = vld [vmem:[%s4 + $0x78] sm:$0xff]
    %422 = vset.pattern.permute.xlu0 0
    %423 = vperm.xlu0 %422, %v405
    %v424 = vpop.permute.xlu0 %423
    %427 = vset.pattern.permute.xlu0 0
    %428 = vperm.xlu0 %427, %v406
    %v429 = vpop.permute.xlu0 %428
    %432 = vset.pattern.permute.xlu0 0
    %433 = vperm.xlu0 %432, %v407
    %v434 = vpop.permute.xlu0 %433
    %437 = vset.pattern.permute.xlu0 0
    %438 = vperm.xlu0 %437, %v408
    %v439 = vpop.permute.xlu0 %438
    %442 = vset.pattern.permute.xlu0 0
    %443 = vperm.xlu0 %442, %v409
    %v444 = vpop.permute.xlu0 %443
    %447 = vset.pattern.permute.xlu0 0
    %448 = vperm.xlu0 %447, %v410
    %v449 = vpop.permute.xlu0 %448
    %452 = vset.pattern.permute.xlu0 0
    %453 = vperm.xlu0 %452, %v411
    %v454 = vpop.permute.xlu0 %453
    %457 = vset.pattern.permute.xlu0 0
    %458 = vperm.xlu0 %457, %v412
    %v459 = vpop.permute.xlu0 %458
    %462 = vset.pattern.permute.xlu0 0
    %463 = vperm.xlu0 %462, %v413
    %v464 = vpop.permute.xlu0 %463
    %467 = vset.pattern.permute.xlu0 0
    %468 = vperm.xlu0 %467, %v414
    %v469 = vpop.permute.xlu0 %468
    %472 = vset.pattern.permute.xlu0 0
    %473 = vperm.xlu0 %472, %v415
    %v474 = vpop.permute.xlu0 %473
    %477 = vset.pattern.permute.xlu0 0
    %478 = vperm.xlu0 %477, %v416
    %v479 = vpop.permute.xlu0 %478
    %482 = vset.pattern.permute.xlu0 0
    %483 = vperm.xlu0 %482, %v417
    %v484 = vpop.permute.xlu0 %483
    %487 = vset.pattern.permute.xlu0 0
    %488 = vperm.xlu0 %487, %v418
    %v489 = vpop.permute.xlu0 %488
    %492 = vset.pattern.permute.xlu0 0
    %493 = vperm.xlu0 %492, %v419
    %v494 = vpop.permute.xlu0 %493
    %497 = vset.pattern.permute.xlu0 0
    %498 = vperm.xlu0 %497, %v420
    %v499 = vpop.permute.xlu0 %498
    %v517 = vunpack.c.l.b16 %v365
    %v518 = vunpack.c.l.b16 %v366
    %v519 = vunpack.c.l.b16 %v367
    %v520 = vunpack.c.l.b16 %v368
    %v521 = vunpack.c.l.b16 %v369
    %v522 = vunpack.c.l.b16 %v370
    %v523 = vunpack.c.l.b16 %v371
    %v524 = vunpack.c.l.b16 %v372
    %v525 = vunpack.c.l.b16 %v373
    %v526 = vunpack.c.l.b16 %v374
    %v527 = vunpack.c.l.b16 %v375
    %v528 = vunpack.c.l.b16 %v376
    %v529 = vunpack.c.l.b16 %v377
    %v530 = vunpack.c.l.b16 %v378
    %v531 = vunpack.c.l.b16 %v379
    %v532 = vunpack.c.l.b16 %v380
    %v533 = vpack.c.b16 %v518, %v517
    %v534 = vpack.c.b16 %v520, %v519
    %v535 = vpack.c.b16 %v522, %v521
    %v536 = vpack.c.b16 %v524, %v523
    %v537 = vpack.c.b16 %v526, %v525
    %v538 = vpack.c.b16 %v528, %v527
    %v539 = vpack.c.b16 %v530, %v529
    %v540 = vpack.c.b16 %v532, %v531
    %549 = vmatpush.bf16.msra.mxu0 %v404
    %550 = vmatpush.bf16.msra.mxu0 %v403
    %551 = vmatpush.bf16.msra.mxu0 %v402
    %552 = vmatpush.bf16.msra.mxu0 %v401
    %553 = vmatpush.bf16.msra.mxu0 %v400
    %554 = vmatpush.bf16.msra.mxu0 %v399
    %555 = vmatpush.bf16.msra.mxu0 %v398
    %556 = vmatpush.bf16.msra.mxu0 %v397
    %557 = vmatmul.bf16.gmra.mxu0 %v533
    %v558 = vpop.f32.mrf.mxu0
    %v559 = vadd.f32 %v424, %v558
    %v560 = vpop.f32.mrf.mxu0
    %v561 = vadd.f32 %v429, %v560
    %562 = vmatmul.bf16.gmra.mxu0 %v534
    %v563 = vpop.f32.mrf.mxu0
    %v564 = vadd.f32 %v434, %v563
    %v565 = vpop.f32.mrf.mxu0
    %v566 = vadd.f32 %v439, %v565
    %567 = vmatmul.bf16.gmra.mxu0 %v535
    %v568 = vpop.f32.mrf.mxu0
    %v569 = vadd.f32 %v444, %v568
    %v570 = vpop.f32.mrf.mxu0
    %v571 = vadd.f32 %v449, %v570
    %572 = vmatmul.bf16.gmra.mxu0 %v536
    %v573 = vpop.f32.mrf.mxu0
    %v574 = vadd.f32 %v454, %v573
    %v575 = vpop.f32.mrf.mxu0
    %v576 = vadd.f32 %v459, %v575
    %577 = vmatmul.bf16.gmra.mxu0 %v537
    %v578 = vpop.f32.mrf.mxu0
    %v579 = vadd.f32 %v464, %v578
    %v580 = vpop.f32.mrf.mxu0
    %v581 = vadd.f32 %v469, %v580
    %582 = vmatmul.bf16.gmra.mxu0 %v538
    %v583 = vpop.f32.mrf.mxu0
    %v584 = vadd.f32 %v474, %v583
    %v585 = vpop.f32.mrf.mxu0
    %v586 = vadd.f32 %v479, %v585
    %587 = vmatmul.bf16.gmra.mxu0 %v539
    %v588 = vpop.f32.mrf.mxu0
    %v589 = vadd.f32 %v484, %v588
    %v590 = vpop.f32.mrf.mxu0
    %v591 = vadd.f32 %v489, %v590
    %592 = vmatmul.bf16.gmra.mxu0 %v540
    %v593 = vpop.f32.mrf.mxu0
    %v594 = vadd.f32 %v494, %v593
    %v595 = vpop.f32.mrf.mxu0
    %v596 = vadd.f32 %v499, %v595
    %597 = vdwg.mxu0
    %v598 = vld [vmem:[%s5] sm:$0xf]
    %v599 = vld [vmem:[%s5 + $0x4] sm:$0xf]
    %v600 = vld [vmem:[%s5 + $0x8] sm:$0xf]
    %v601 = vld [vmem:[%s5 + $0xc] sm:$0xf]
    %v602 = vld [vmem:[%s5 + $0x10] sm:$0xf]
    %v603 = vld [vmem:[%s5 + $0x14] sm:$0xf]
    %v604 = vld [vmem:[%s5 + $0x18] sm:$0xf]
    %v605 = vld [vmem:[%s5 + $0x1c] sm:$0xf]
    %v606 = vld [vmem:[%s5 + $0x20] sm:$0xf]
    %v607 = vld [vmem:[%s5 + $0x24] sm:$0xf]
    %v608 = vld [vmem:[%s5 + $0x28] sm:$0xf]
    %v609 = vld [vmem:[%s5 + $0x2c] sm:$0xf]
    %v610 = vld [vmem:[%s5 + $0x30] sm:$0xf]
    %v611 = vld [vmem:[%s5 + $0x34] sm:$0xf]
    %v612 = vld [vmem:[%s5 + $0x38] sm:$0xf]
    %v613 = vld [vmem:[%s5 + $0x3c] sm:$0xf]
    %v614 = vtanh.pop %v559
    %v615 = vtanh.pop %v561
    %v616 = vtanh.pop %v564
    %v617 = vtanh.pop %v566
    %v618 = vtanh.pop %v569
    %v619 = vtanh.pop %v571
    %v620 = vtanh.pop %v574
    %v621 = vtanh.pop %v576
    %v622 = vtanh.pop %v579
    %v623 = vtanh.pop %v581
    %v624 = vtanh.pop %v584
    %v625 = vtanh.pop %v586
    %v626 = vtanh.pop %v589
    %v627 = vtanh.pop %v591
    %v628 = vtanh.pop %v594
    %v629 = vtanh.pop %v596
    %v630 = vpack.c.bf16 %v615, %v614
    %v631 = vpack.c.bf16 %v617, %v616
    %v632 = vpack.c.bf16 %v619, %v618
    %v633 = vpack.c.bf16 %v621, %v620
    %v634 = vpack.c.bf16 %v623, %v622
    %v635 = vpack.c.bf16 %v625, %v624
    %v636 = vpack.c.bf16 %v627, %v626
    %v637 = vpack.c.bf16 %v629, %v628
    %v638 = vld [vmem:[%s6] sm:$0xff]
    %v639 = vld [vmem:[%s6 + $0x8] sm:$0xff]
    %v640 = vld [vmem:[%s6 + $0x10] sm:$0xff]
    %v641 = vld [vmem:[%s6 + $0x18] sm:$0xff]
    %v642 = vld [vmem:[%s6 + $0x20] sm:$0xff]
    %v643 = vld [vmem:[%s6 + $0x28] sm:$0xff]
    %v644 = vld [vmem:[%s6 + $0x30] sm:$0xff]
    %v645 = vld [vmem:[%s6 + $0x38] sm:$0xff]
    %v646 = vld [vmem:[%s6 + $0x40] sm:$0xff]
    %v647 = vld [vmem:[%s6 + $0x48] sm:$0xff]
    %v648 = vld [vmem:[%s6 + $0x50] sm:$0xff]
    %v649 = vld [vmem:[%s6 + $0x58] sm:$0xff]
    %v650 = vld [vmem:[%s6 + $0x60] sm:$0xff]
    %v651 = vld [vmem:[%s6 + $0x68] sm:$0xff]
    %v652 = vld [vmem:[%s6 + $0x70] sm:$0xff]
    %v653 = vld [vmem:[%s6 + $0x78] sm:$0xff]
    %655 = vset.pattern.permute.xlu0 0
    %656 = vperm.xlu0 %655, %v638
    %v657 = vpop.permute.xlu0 %656
    %660 = vset.pattern.permute.xlu0 0
    %661 = vperm.xlu0 %660, %v639
    %v662 = vpop.permute.xlu0 %661
    %665 = vset.pattern.permute.xlu0 0
    %666 = vperm.xlu0 %665, %v640
    %v667 = vpop.permute.xlu0 %666
    %670 = vset.pattern.permute.xlu0 0
    %671 = vperm.xlu0 %670, %v641
    %v672 = vpop.permute.xlu0 %671
    %675 = vset.pattern.permute.xlu0 0
    %676 = vperm.xlu0 %675, %v642
    %v677 = vpop.permute.xlu0 %676
    %680 = vset.pattern.permute.xlu0 0
    %681 = vperm.xlu0 %680, %v643
    %v682 = vpop.permute.xlu0 %681
    %685 = vset.pattern.permute.xlu0 0
    %686 = vperm.xlu0 %685, %v644
    %v687 = vpop.permute.xlu0 %686
    %690 = vset.pattern.permute.xlu0 0
    %691 = vperm.xlu0 %690, %v645
    %v692 = vpop.permute.xlu0 %691
    %695 = vset.pattern.permute.xlu0 0
    %696 = vperm.xlu0 %695, %v646
    %v697 = vpop.permute.xlu0 %696
    %700 = vset.pattern.permute.xlu0 0
    %701 = vperm.xlu0 %700, %v647
    %v702 = vpop.permute.xlu0 %701
    %705 = vset.pattern.permute.xlu0 0
    %706 = vperm.xlu0 %705, %v648
    %v707 = vpop.permute.xlu0 %706
    %710 = vset.pattern.permute.xlu0 0
    %711 = vperm.xlu0 %710, %v649
    %v712 = vpop.permute.xlu0 %711
    %715 = vset.pattern.permute.xlu0 0
    %716 = vperm.xlu0 %715, %v650
    %v717 = vpop.permute.xlu0 %716
    %720 = vset.pattern.permute.xlu0 0
    %721 = vperm.xlu0 %720, %v651
    %v722 = vpop.permute.xlu0 %721
    %725 = vset.pattern.permute.xlu0 0
    %726 = vperm.xlu0 %725, %v652
    %v727 = vpop.permute.xlu0 %726
    %730 = vset.pattern.permute.xlu0 0
    %731 = vperm.xlu0 %730, %v653
    %v732 = vpop.permute.xlu0 %731
    %v750 = vunpack.c.l.b16 %v598
    %v751 = vunpack.c.l.b16 %v599
    %v752 = vunpack.c.l.b16 %v600
    %v753 = vunpack.c.l.b16 %v601
    %v754 = vunpack.c.l.b16 %v602
    %v755 = vunpack.c.l.b16 %v603
    %v756 = vunpack.c.l.b16 %v604
    %v757 = vunpack.c.l.b16 %v605
    %v758 = vunpack.c.l.b16 %v606
    %v759 = vunpack.c.l.b16 %v607
    %v760 = vunpack.c.l.b16 %v608
    %v761 = vunpack.c.l.b16 %v609
    %v762 = vunpack.c.l.b16 %v610
    %v763 = vunpack.c.l.b16 %v611
    %v764 = vunpack.c.l.b16 %v612
    %v765 = vunpack.c.l.b16 %v613
    %v766 = vpack.c.b16 %v751, %v750
    %v767 = vpack.c.b16 %v753, %v752
    %v768 = vpack.c.b16 %v755, %v754
    %v769 = vpack.c.b16 %v757, %v756
    %v770 = vpack.c.b16 %v759, %v758
    %v771 = vpack.c.b16 %v761, %v760
    %v772 = vpack.c.b16 %v763, %v762
    %v773 = vpack.c.b16 %v765, %v764
    %782 = vmatpush.bf16.msra.mxu0 %v637
    %783 = vmatpush.bf16.msra.mxu0 %v636
    %784 = vmatpush.bf16.msra.mxu0 %v635
    %785 = vmatpush.bf16.msra.mxu0 %v634
    %786 = vmatpush.bf16.msra.mxu0 %v633
    %787 = vmatpush.bf16.msra.mxu0 %v632
    %788 = vmatpush.bf16.msra.mxu0 %v631
    %789 = vmatpush.bf16.msra.mxu0 %v630
    %790 = vmatmul.bf16.gmra.mxu0 %v766
    %v791 = vpop.f32.mrf.mxu0
    %v792 = vadd.f32 %v657, %v791
    %v793 = vpop.f32.mrf.mxu0
    %v794 = vadd.f32 %v662, %v793
    %795 = vmatmul.bf16.gmra.mxu0 %v767
    %v796 = vpop.f32.mrf.mxu0
    %v797 = vadd.f32 %v667, %v796
    %v798 = vpop.f32.mrf.mxu0
    %v799 = vadd.f32 %v672, %v798
    %800 = vmatmul.bf16.gmra.mxu0 %v768
    %v801 = vpop.f32.mrf.mxu0
    %v802 = vadd.f32 %v677, %v801
    %v803 = vpop.f32.mrf.mxu0
    %v804 = vadd.f32 %v682, %v803
    %805 = vmatmul.bf16.gmra.mxu0 %v769
    %v806 = vpop.f32.mrf.mxu0
    %v807 = vadd.f32 %v687, %v806
    %v808 = vpop.f32.mrf.mxu0
    %v809 = vadd.f32 %v692, %v808
    %810 = vmatmul.bf16.gmra.mxu0 %v770
    %v811 = vpop.f32.mrf.mxu0
    %v812 = vadd.f32 %v697, %v811
    %v813 = vpop.f32.mrf.mxu0
    %v814 = vadd.f32 %v702, %v813
    %815 = vmatmul.bf16.gmra.mxu0 %v771
    %v816 = vpop.f32.mrf.mxu0
    %v817 = vadd.f32 %v707, %v816
    %v818 = vpop.f32.mrf.mxu0
    %v819 = vadd.f32 %v712, %v818
    %820 = vmatmul.bf16.gmra.mxu0 %v772
    %v821 = vpop.f32.mrf.mxu0
    %v822 = vadd.f32 %v717, %v821
    %v823 = vpop.f32.mrf.mxu0
    %v824 = vadd.f32 %v722, %v823
    %825 = vmatmul.bf16.gmra.mxu0 %v773
    %v826 = vpop.f32.mrf.mxu0
    %v827 = vadd.f32 %v727, %v826
    %v828 = vpop.f32.mrf.mxu0
    %v829 = vadd.f32 %v732, %v828
    %830 = vdwg.mxu0
    %v831 = vld [vmem:[%s7] sm:$0xf]
    %v832 = vld [vmem:[%s7 + $0x4] sm:$0xf]
    %v833 = vld [vmem:[%s7 + $0x8] sm:$0xf]
    %v834 = vld [vmem:[%s7 + $0xc] sm:$0xf]
    %v835 = vld [vmem:[%s7 + $0x10] sm:$0xf]
    %v836 = vld [vmem:[%s7 + $0x14] sm:$0xf]
    %v837 = vld [vmem:[%s7 + $0x18] sm:$0xf]
    %v838 = vld [vmem:[%s7 + $0x1c] sm:$0xf]
    %v839 = vld [vmem:[%s7 + $0x20] sm:$0xf]
    %v840 = vld [vmem:[%s7 + $0x24] sm:$0xf]
    %v841 = vld [vmem:[%s7 + $0x28] sm:$0xf]
    %v842 = vld [vmem:[%s7 + $0x2c] sm:$0xf]
    %v843 = vld [vmem:[%s7 + $0x30] sm:$0xf]
    %v844 = vld [vmem:[%s7 + $0x34] sm:$0xf]
    %v845 = vld [vmem:[%s7 + $0x38] sm:$0xf]
    %v846 = vld [vmem:[%s7 + $0x3c] sm:$0xf]
    %v847 = vtanh.pop %v792
    %v848 = vtanh.pop %v794
    %v849 = vtanh.pop %v797
    %v850 = vtanh.pop %v799
    %v851 = vtanh.pop %v802
    %v852 = vtanh.pop %v804
    %v853 = vtanh.pop %v807
    %v854 = vtanh.pop %v809
    %v855 = vtanh.pop %v812
    %v856 = vtanh.pop %v814
    %v857 = vtanh.pop %v817
    %v858 = vtanh.pop %v819
    %v859 = vtanh.pop %v822
    %v860 = vtanh.pop %v824
    %v861 = vtanh.pop %v827
    %v862 = vtanh.pop %v829
    %v863 = vpack.c.bf16 %v848, %v847
    %v864 = vpack.c.bf16 %v850, %v849
    %v865 = vpack.c.bf16 %v852, %v851
    %v866 = vpack.c.bf16 %v854, %v853
    %v867 = vpack.c.bf16 %v856, %v855
    %v868 = vpack.c.bf16 %v858, %v857
    %v869 = vpack.c.bf16 %v860, %v859
    %v870 = vpack.c.bf16 %v862, %v861
    %v871 = vld [vmem:[%s8] sm:$0xff]
    %v872 = vld [vmem:[%s8 + $0x8] sm:$0xff]
    %v873 = vld [vmem:[%s8 + $0x10] sm:$0xff]
    %v874 = vld [vmem:[%s8 + $0x18] sm:$0xff]
    %v875 = vld [vmem:[%s8 + $0x20] sm:$0xff]
    %v876 = vld [vmem:[%s8 + $0x28] sm:$0xff]
    %v877 = vld [vmem:[%s8 + $0x30] sm:$0xff]
    %v878 = vld [vmem:[%s8 + $0x38] sm:$0xff]
    %v879 = vld [vmem:[%s8 + $0x40] sm:$0xff]
    %v880 = vld [vmem:[%s8 + $0x48] sm:$0xff]
    %v881 = vld [vmem:[%s8 + $0x50] sm:$0xff]
    %v882 = vld [vmem:[%s8 + $0x58] sm:$0xff]
    %v883 = vld [vmem:[%s8 + $0x60] sm:$0xff]
    %v884 = vld [vmem:[%s8 + $0x68] sm:$0xff]
    %v885 = vld [vmem:[%s8 + $0x70] sm:$0xff]
    %v886 = vld [vmem:[%s8 + $0x78] sm:$0xff]
    %888 = vset.pattern.permute.xlu0 0
    %889 = vperm.xlu0 %888, %v871
    %v890 = vpop.permute.xlu0 %889
    %893 = vset.pattern.permute.xlu0 0
    %894 = vperm.xlu0 %893, %v872
    %v895 = vpop.permute.xlu0 %894
    %898 = vset.pattern.permute.xlu0 0
    %899 = vperm.xlu0 %898, %v873
    %v900 = vpop.permute.xlu0 %899
    %903 = vset.pattern.permute.xlu0 0
    %904 = vperm.xlu0 %903, %v874
    %v905 = vpop.permute.xlu0 %904
    %908 = vset.pattern.permute.xlu0 0
    %909 = vperm.xlu0 %908, %v875
    %v910 = vpop.permute.xlu0 %909
    %913 = vset.pattern.permute.xlu0 0
    %914 = vperm.xlu0 %913, %v876
    %v915 = vpop.permute.xlu0 %914
    %918 = vset.pattern.permute.xlu0 0
    %919 = vperm.xlu0 %918, %v877
    %v920 = vpop.permute.xlu0 %919
    %923 = vset.pattern.permute.xlu0 0
    %924 = vperm.xlu0 %923, %v878
    %v925 = vpop.permute.xlu0 %924
    %928 = vset.pattern.permute.xlu0 0
    %929 = vperm.xlu0 %928, %v879
    %v930 = vpop.permute.xlu0 %929
    %933 = vset.pattern.permute.xlu0 0
    %934 = vperm.xlu0 %933, %v880
    %v935 = vpop.permute.xlu0 %934
    %938 = vset.pattern.permute.xlu0 0
    %939 = vperm.xlu0 %938, %v881
    %v940 = vpop.permute.xlu0 %939
    %943 = vset.pattern.permute.xlu0 0
    %944 = vperm.xlu0 %943, %v882
    %v945 = vpop.permute.xlu0 %944
    %948 = vset.pattern.permute.xlu0 0
    %949 = vperm.xlu0 %948, %v883
    %v950 = vpop.permute.xlu0 %949
    %953 = vset.pattern.permute.xlu0 0
    %954 = vperm.xlu0 %953, %v884
    %v955 = vpop.permute.xlu0 %954
    %958 = vset.pattern.permute.xlu0 0
    %959 = vperm.xlu0 %958, %v885
    %v960 = vpop.permute.xlu0 %959
    %963 = vset.pattern.permute.xlu0 0
    %964 = vperm.xlu0 %963, %v886
    %v965 = vpop.permute.xlu0 %964
    %v983 = vunpack.c.l.b16 %v831
    %v984 = vunpack.c.l.b16 %v832
    %v985 = vunpack.c.l.b16 %v833
    %v986 = vunpack.c.l.b16 %v834
    %v987 = vunpack.c.l.b16 %v835
    %v988 = vunpack.c.l.b16 %v836
    %v989 = vunpack.c.l.b16 %v837
    %v990 = vunpack.c.l.b16 %v838
    %v991 = vunpack.c.l.b16 %v839
    %v992 = vunpack.c.l.b16 %v840
    %v993 = vunpack.c.l.b16 %v841
    %v994 = vunpack.c.l.b16 %v842
    %v995 = vunpack.c.l.b16 %v843
    %v996 = vunpack.c.l.b16 %v844
    %v997 = vunpack.c.l.b16 %v845
    %v998 = vunpack.c.l.b16 %v846
    %v999 = vpack.c.b16 %v984, %v983
    %v1000 = vpack.c.b16 %v986, %v985
    %v1001 = vpack.c.b16 %v988, %v987
    %v1002 = vpack.c.b16 %v990, %v989
    %v1003 = vpack.c.b16 %v992, %v991
    %v1004 = vpack.c.b16 %v994, %v993
    %v1005 = vpack.c.b16 %v996, %v995
    %v1006 = vpack.c.b16 %v998, %v997
    %1015 = vmatpush.bf16.msra.mxu0 %v870
    %1016 = vmatpush.bf16.msra.mxu0 %v869
    %1017 = vmatpush.bf16.msra.mxu0 %v868
    %1018 = vmatpush.bf16.msra.mxu0 %v867
    %1019 = vmatpush.bf16.msra.mxu0 %v866
    %1020 = vmatpush.bf16.msra.mxu0 %v865
    %1021 = vmatpush.bf16.msra.mxu0 %v864
    %1022 = vmatpush.bf16.msra.mxu0 %v863
    %1023 = vmatmul.bf16.gmra.mxu0 %v999
    %v1024 = vpop.f32.mrf.mxu0
    %v1025 = vadd.f32 %v890, %v1024
    %v1026 = vpop.f32.mrf.mxu0
    %v1027 = vadd.f32 %v895, %v1026
    %1028 = vmatmul.bf16.gmra.mxu0 %v1000
    %v1029 = vpop.f32.mrf.mxu0
    %v1030 = vadd.f32 %v900, %v1029
    %v1031 = vpop.f32.mrf.mxu0
    %v1032 = vadd.f32 %v905, %v1031
    %1033 = vmatmul.bf16.gmra.mxu0 %v1001
    %v1034 = vpop.f32.mrf.mxu0
    %v1035 = vadd.f32 %v910, %v1034
    %v1036 = vpop.f32.mrf.mxu0
    %v1037 = vadd.f32 %v915, %v1036
    %1038 = vmatmul.bf16.gmra.mxu0 %v1002
    %v1039 = vpop.f32.mrf.mxu0
    %v1040 = vadd.f32 %v920, %v1039
    %v1041 = vpop.f32.mrf.mxu0
    %v1042 = vadd.f32 %v925, %v1041
    %1043 = vmatmul.bf16.gmra.mxu0 %v1003
    %v1044 = vpop.f32.mrf.mxu0
    %v1045 = vadd.f32 %v930, %v1044
    %v1046 = vpop.f32.mrf.mxu0
    %v1047 = vadd.f32 %v935, %v1046
    %1048 = vmatmul.bf16.gmra.mxu0 %v1004
    %v1049 = vpop.f32.mrf.mxu0
    %v1050 = vadd.f32 %v940, %v1049
    %v1051 = vpop.f32.mrf.mxu0
    %v1052 = vadd.f32 %v945, %v1051
    %1053 = vmatmul.bf16.gmra.mxu0 %v1005
    %v1054 = vpop.f32.mrf.mxu0
    %v1055 = vadd.f32 %v950, %v1054
    %v1056 = vpop.f32.mrf.mxu0
    %v1057 = vadd.f32 %v955, %v1056
    %1058 = vmatmul.bf16.gmra.mxu0 %v1006
    %v1059 = vpop.f32.mrf.mxu0
    %v1060 = vadd.f32 %v960, %v1059
    %v1061 = vpop.f32.mrf.mxu0
    %v1062 = vadd.f32 %v965, %v1061
    %1063 = vdwg.mxu0
    %v1064 = vtanh.pop %v1025
    %v1065 = vtanh.pop %v1027
    %v1066 = vtanh.pop %v1030
    %v1067 = vtanh.pop %v1032
    %v1068 = vtanh.pop %v1035
    %v1069 = vtanh.pop %v1037
    %v1070 = vtanh.pop %v1040
    %v1071 = vtanh.pop %v1042
    %v1072 = vtanh.pop %v1045
    %v1073 = vtanh.pop %v1047
    %v1074 = vtanh.pop %v1050
    %v1075 = vtanh.pop %v1052
    %v1076 = vtanh.pop %v1055
    %v1077 = vtanh.pop %v1057
    %v1078 = vtanh.pop %v1060
    %v1079 = vtanh.pop %v1062
    %v1080 = vld [vmem:[%s9] sm:$0xff]
    %v1081 = vld [vmem:[%s9 + $0x8] sm:$0xff]
    %v1082 = vld [vmem:[%s9 + $0x10] sm:$0xff]
    %v1083 = vld [vmem:[%s9 + $0x18] sm:$0xff]
    %v1084 = vld [vmem:[%s9 + $0x20] sm:$0xff]
    %v1085 = vld [vmem:[%s9 + $0x28] sm:$0xff]
    %v1086 = vld [vmem:[%s9 + $0x30] sm:$0xff]
    %v1087 = vld [vmem:[%s9 + $0x38] sm:$0xff]
    %v1088 = vld [vmem:[%s9 + $0x40] sm:$0xff]
    %v1089 = vld [vmem:[%s9 + $0x48] sm:$0xff]
    %v1090 = vld [vmem:[%s9 + $0x50] sm:$0xff]
    %v1091 = vld [vmem:[%s9 + $0x58] sm:$0xff]
    %v1092 = vld [vmem:[%s9 + $0x60] sm:$0xff]
    %v1093 = vld [vmem:[%s9 + $0x68] sm:$0xff]
    %v1094 = vld [vmem:[%s9 + $0x70] sm:$0xff]
    %v1095 = vld [vmem:[%s9 + $0x78] sm:$0xff]
    %1097 = vset.pattern.permute.xlu0 0
    %1098 = vperm.xlu0 %1097, %v1080
    %v1099 = vpop.permute.xlu0 %1098
    %1102 = vset.pattern.permute.xlu0 0
    %1103 = vperm.xlu0 %1102, %v1081
    %v1104 = vpop.permute.xlu0 %1103
    %1107 = vset.pattern.permute.xlu0 0
    %1108 = vperm.xlu0 %1107, %v1082
    %v1109 = vpop.permute.xlu0 %1108
    %1112 = vset.pattern.permute.xlu0 0
    %1113 = vperm.xlu0 %1112, %v1083
    %v1114 = vpop.permute.xlu0 %1113
    %1117 = vset.pattern.permute.xlu0 0
    %1118 = vperm.xlu0 %1117, %v1084
    %v1119 = vpop.permute.xlu0 %1118
    %1122 = vset.pattern.permute.xlu0 0
    %1123 = vperm.xlu0 %1122, %v1085
    %v1124 = vpop.permute.xlu0 %1123
    %1127 = vset.pattern.permute.xlu0 0
    %1128 = vperm.xlu0 %1127, %v1086
    %v1129 = vpop.permute.xlu0 %1128
    %1132 = vset.pattern.permute.xlu0 0
    %1133 = vperm.xlu0 %1132, %v1087
    %v1134 = vpop.permute.xlu0 %1133
    %1137 = vset.pattern.permute.xlu0 0
    %1138 = vperm.xlu0 %1137, %v1088
    %v1139 = vpop.permute.xlu0 %1138
    %1142 = vset.pattern.permute.xlu0 0
    %1143 = vperm.xlu0 %1142, %v1089
    %v1144 = vpop.permute.xlu0 %1143
    %1147 = vset.pattern.permute.xlu0 0
    %1148 = vperm.xlu0 %1147, %v1090
    %v1149 = vpop.permute.xlu0 %1148
    %1152 = vset.pattern.permute.xlu0 0
    %1153 = vperm.xlu0 %1152, %v1091
    %v1154 = vpop.permute.xlu0 %1153
    %1157 = vset.pattern.permute.xlu0 0
    %1158 = vperm.xlu0 %1157, %v1092
    %v1159 = vpop.permute.xlu0 %1158
    %1162 = vset.pattern.permute.xlu0 0
    %1163 = vperm.xlu0 %1162, %v1093
    %v1164 = vpop.permute.xlu0 %1163
    %1167 = vset.pattern.permute.xlu0 0
    %1168 = vperm.xlu0 %1167, %v1094
    %v1169 = vpop.permute.xlu0 %1168
    %1172 = vset.pattern.permute.xlu0 0
    %1173 = vperm.xlu0 %1172, %v1095
    %v1174 = vpop.permute.xlu0 %1173
    %v1176 = vmul.f32 %v1064, %v1099
    %v1177 = vmul.f32 %v1065, %v1104
    %v1178 = vmul.f32 %v1066, %v1109
    %v1179 = vmul.f32 %v1067, %v1114
    %v1180 = vmul.f32 %v1068, %v1119
    %v1181 = vmul.f32 %v1069, %v1124
    %v1182 = vmul.f32 %v1070, %v1129
    %v1183 = vmul.f32 %v1071, %v1134
    %v1184 = vmul.f32 %v1072, %v1139
    %v1185 = vmul.f32 %v1073, %v1144
    %v1186 = vmul.f32 %v1074, %v1149
    %v1187 = vmul.f32 %v1075, %v1154
    %v1188 = vmul.f32 %v1076, %v1159
    %v1189 = vmul.f32 %v1077, %v1164
    %v1190 = vmul.f32 %v1078, %v1169
    %v1191 = vmul.f32 %v1079, %v1174
    %v1192 = vadd.f32 %v1176, %v1177
    %v1193 = vadd.f32 %v1192, %v1178
    %v1194 = vadd.f32 %v1193, %v1179
    %v1195 = vadd.f32 %v1194, %v1180
    %v1196 = vadd.f32 %v1195, %v1181
    %v1197 = vadd.f32 %v1196, %v1182
    %v1198 = vadd.f32 %v1197, %v1183
    %v1199 = vadd.f32 %v1198, %v1184
    %v1200 = vadd.f32 %v1199, %v1185
    %v1201 = vadd.f32 %v1200, %v1186
    %v1202 = vadd.f32 %v1201, %v1187
    %v1203 = vadd.f32 %v1202, %v1188
    %v1204 = vadd.f32 %v1203, %v1189
    %v1205 = vadd.f32 %v1204, %v1190
    %v1206 = vadd.f32 %v1205, %v1191
    %v1207 = vrot.slane %v1206, 4
    %v1208 = vadd.f32 %v1206, %v1207
    %v1209 = vrot.slane %v1208, 2
    %v1210 = vadd.f32 %v1208, %v1209
    %v1211 = vrot.slane %v1210, 1
    %v1212 = vadd.f32 %v1210, %v1211
    %v1213 = vld [vmem:[#allocation2] sm:$0x1]
    %1215 = vset.pattern.permute.xlu0 0
    %1216 = vperm.xlu0 %1215, %v1213
    %v1217 = vpop.permute.xlu0 %1216
    %v1219 = vperm.slane %v1217, 0
    %v1220 = vadd.f32 %v1212, %v1219
    %1221 = vst [vmem:[#allocation3] sm:$0x1] %v1220
    // Predicated region
    $region46: #{tpu_custom_call.1} parent=1 // pred_check
      _
    $region47: #{tpu_custom_call.1} parent=1 // pred_check_branch
      %1223 = sbr.rel (0) target = $region49
    $region48: #{tpu_custom_call.1} parent=1 // pred_region
      %1225 = vsyncadd [#allocation4], 0
      %s1227 = sshll.u32 [#allocation3], 4
      %s1228 = int_to_ptr.vmem [resolvable:$true] %s1227
      %s1229 = sshll.u32 %s11, 4
      %s1230 = int_to_ptr.hbm [resolvable:$true] %s1229
      %1232 = dma.vmem_to_hbm [thread:$0]  %s1228, 16, %s1230, [#allocation4]
    $region49: #{tpu_custom_call.1} parent=1 // pred_fallthru
      _
    // Predicated region
    $region50: #{tpu_custom_call.1} parent=1 // pred_check
      _
    $region51: #{tpu_custom_call.1} parent=1 // pred_check_branch
      %1234 = sbr.rel (0) target = $region53
    $region52: #{tpu_custom_call.1} parent=1 // pred_region
      %1236 = dma.done [#allocation4], 16
    $region53: #{tpu_custom_call.1} parent=1 // pred_fallthru
      _
    %1237 = vsyncpa [#allocation4], 1

</llo_original>
